<compile_context>
chip_gen: v6e
topology: v6e:2x2x1
jax: 0.10.0
libtpu: 0.0.40
codegen_flags: <defaults>
</compile_context>

<pallas_src>
from functools import partial

import numpy as np

import jax
import jax.numpy as jnp
from jax.experimental import pallas as pl
from jax.experimental.pallas import tpu as pltpu


def _onehot_gather_matmul(x, sel, n_chunks):
    """Gather rows of `x` through a bf16 one-hot matrix `sel` on the MXU.

    n_chunks == 1: x is (or is safely castable to) bf16; single exact matmul.
    n_chunks == 3: error-free 3-way bf16 split of f32 x, summed in f32, so the
    one-hot matmul reproduces f32 values exactly regardless of MXU native width.
    """
    if n_chunks == 1:
        return jnp.dot(x.astype(jnp.bfloat16), sel,
                       preferred_element_type=jnp.float32)
    rem = x.astype(jnp.float32)
    total = None
    for c in range(n_chunks):
        chunk = rem.astype(jnp.bfloat16)
        if c + 1 < n_chunks:
            rem = rem - chunk.astype(jnp.float32)
        d = jnp.dot(chunk, sel, preferred_element_type=jnp.float32)
        total = d if total is None else total + d
    return total


def _kernel_single(x_ref, sel_ref, o_ref, *, n_chunks):
    # Single K block: no accumulator, no branches; write the output tile directly.
    o_ref[...] = _onehot_gather_matmul(
        x_ref[...], sel_ref[...], n_chunks).astype(o_ref.dtype)


def _kernel_accum(x_ref, sel_ref, o_ref, acc_ref, *, n_chunks, k_valid, tk):
    # x_ref:   (tr, tk)        input rows (N*C folded), spatial-reduction chunk
    # sel_ref: (tk, HWo) bf16  one-hot gather matrix chunk (K axis zero-padded)
    # o_ref:   (tr, HWo)       flattened resized output rows
    # acc_ref: (tr, HWo) f32   accumulator across the K grid axis
    k = pl.program_id(1)

    @pl.when(k == 0)
    def _init():
        acc_ref[...] = jnp.zeros_like(acc_ref)

    x = x_ref[...]
    if k_valid is not None:
        # The last K block reads past H*W (garbage in the out-of-bounds window).
        # sel's padded rows are zero, but 0 * NaN/Inf would still poison the
        # accumulator, so mask the invalid columns explicitly (cheap VPU work).
        col = k * tk + jax.lax.broadcasted_iota(jnp.int32, x.shape, 1)
        x = jnp.where(col < k_valid, x, jnp.zeros_like(x))

    acc_ref[...] += _onehot_gather_matmul(x, sel_ref[...], n_chunks)

    @pl.when(k == pl.num_programs(1) - 1)
    def _store():
        o_ref[...] = acc_ref[...].astype(o_ref.dtype)


def _nearest_indices(in_size, out_size):
    # PyTorch F.interpolate(mode='nearest') rule: src = floor(dst * in / out).
    idx = (np.arange(out_size) * in_size) // out_size
    return np.minimum(idx, in_size - 1).astype(np.int64)


def feature_resize_forward(x_nchw, size=(10, 25), *,
                           max_row_tile=256, max_k_tile=2048):
    """x_nchw: (N, C, H, W) -> (N, C, size[0]*size[1]) (interpolate + flatten(2))."""
    N, C, H, W = x_nchw.shape
    Ho, Wo = size
    HWi, HWo = H * W, Ho * Wo
    NC = N * C

    # ---- Static one-hot gather matrix (trace-time numpy; 0/1 exact in bf16). ----
    h_idx = _nearest_indices(H, Ho)
    w_idx = _nearest_indices(W, Wo)
    flat_src = (h_idx[:, None] * W + w_idx[None, :]).reshape(-1)      # (HWo,)

    # K (spatial-reduction) tiling: one block if it fits; otherwise 128-multiple
    # tiles with sel's K axis zero-padded so arbitrary H*W keeps VMEM bounded.
    if HWi <= max_k_tile:
        tk = HWi
        k_pad = HWi
    else:
        tk = max_k_tile                       # multiple of 128
        k_pad = pl.cdiv(HWi, tk) * tk

    sel_np = np.zeros((k_pad, HWo), dtype=np.float32)
    sel_np[flat_src, np.arange(HWo)] = 1.0
    sel = jnp.asarray(sel_np, dtype=jnp.bfloat16)

    x2 = x_nchw.reshape(NC, HWi)                                      # free reshape

    # Row (sublane / M) tile: full N*C when small, else an 8-multiple tile;
    # trailing partial blocks only cost masked stores.
    tr = NC if NC <= max_row_tile else max_row_tile
    grid_r = pl.cdiv(NC, tr)
    grid_k = k_pad // tk

    n_chunks = 1 if x_nchw.dtype == jnp.bfloat16 else 3

    cost = pl.CostEstimate(
        flops=2 * NC * HWi * HWo * n_chunks,
        transcendentals=0,
        bytes_accessed=(NC * HWi + NC * HWo) * x_nchw.dtype.itemsize
        + k_pad * HWo * sel.dtype.itemsize,
    )

    if grid_k == 1:
        # Common case: whole spatial axis in one K block, no accumulator needed.
        out2 = pl.pallas_call(
            partial(_kernel_single, n_chunks=n_chunks),
            out_shape=jax.ShapeDtypeStruct((NC, HWo), x_nchw.dtype),
            grid_spec=pltpu.PrefetchScalarGridSpec(
                num_scalar_prefetch=0,
                grid=(grid_r,),
                in_specs=[
                    pl.BlockSpec((tr, tk), lambda r: (r, 0)),
                    pl.BlockSpec((tk, HWo), lambda r: (0, 0)),
                ],
                out_specs=pl.BlockSpec((tr, HWo), lambda r: (r, 0)),
            ),
            compiler_params=pltpu.CompilerParams(
                dimension_semantics=("parallel",),
                vmem_limit_bytes=32 * 1024 * 1024,
            ),
            cost_estimate=cost,
        )(x2, sel)
    else:
        k_valid = HWi if k_pad != HWi else None
        out2 = pl.pallas_call(
            partial(_kernel_accum, n_chunks=n_chunks, k_valid=k_valid, tk=tk),
            out_shape=jax.ShapeDtypeStruct((NC, HWo), x_nchw.dtype),
            grid_spec=pltpu.PrefetchScalarGridSpec(
                num_scalar_prefetch=0,
                grid=(grid_r, grid_k),
                in_specs=[
                    pl.BlockSpec((tr, tk), lambda r, k: (r, k)),
                    pl.BlockSpec((tk, HWo), lambda r, k: (k, 0)),
                ],
                out_specs=pl.BlockSpec((tr, HWo), lambda r, k: (r, 0)),
                scratch_shapes=[pltpu.VMEM((tr, HWo), jnp.float32)],
            ),
            compiler_params=pltpu.CompilerParams(
                dimension_semantics=("parallel", "arbitrary"),
                vmem_limit_bytes=32 * 1024 * 1024,
            ),
            cost_estimate=cost,
        )(x2, sel)

    return out2.reshape(N, C, HWo)


def feature_resize_reference(x_nchw, size=(10, 25)):
    # Plain-JAX reference with PyTorch's 'nearest' index rule.
    N, C, H, W = x_nchw.shape
    Ho, Wo = size
    h_idx = _nearest_indices(H, Ho)
    w_idx = _nearest_indices(W, Wo)
    y = x_nchw[:, :, h_idx, :][:, :, :, w_idx]
    return y.reshape(N, C, Ho * Wo)


if __name__ == "__main__":
    key = jax.random.PRNGKey(0)
    size = (10, 25)

    # Main small-shape test (single-K-block fast path), f32 input.
    N, C, H, W = 2, 4, 16, 16
    x = jax.random.normal(key, (N, C, H, W), dtype=jnp.float32)
    out = feature_resize_forward(x, size)
    jax.block_until_ready(out)
    ref = feature_resize_reference(x, size)
    assert out.shape == (N, C, size[0] * size[1])
    assert jnp.allclose(out, ref, atol=1e-5, rtol=1e-5)

    # Exercise the accumulating / K-padded path with a tiny non-128-multiple map.
    x2 = jax.random.normal(jax.random.PRNGKey(1), (2, 4, 10, 25), dtype=jnp.float32)
    out2 = feature_resize_forward(x2, size, max_k_tile=128)
    jax.block_until_ready(out2)
    ref2 = feature_resize_reference(x2, size)
    assert jnp.allclose(out2, ref2, atol=1e-5, rtol=1e-5)

    print("KERNEL_OK")
</pallas_src>

<mosaic_0001>
module attributes {stable_mosaic.version = 11 : i64} {
  func.func @_kernel_single(%arg0: i32, %arg1: memref<8x256xf32, #tpu.memory_space<vmem>>, %arg2: memref<256x250xbf16, #tpu.memory_space<vmem>>, %arg3: memref<8x250xf32, #tpu.memory_space<vmem>>) attributes {dimension_semantics = [#tpu.dimension_semantics<parallel>], iteration_bounds = array<i64: 1>, scalar_prefetch = 0 : i64, scratch_operands = 0 : i64, tpu.core_type = #tpu.core_type<tc>, window_params = [{transform_indices = @transform_0, window_bounds = array<i64: 8, 256>}, {pipeline_mode = #tpu.pipeline_mode<synchronous>, transform_indices = @transform_1, window_bounds = array<i64: 256, 250>}, {transform_indices = @transform_2, window_bounds = array<i64: 8, 250>}]} {
    %c0 = arith.constant 0 : index
    %c0_0 = arith.constant 0 : index
    %0 = vector.load %arg1[%c0, %c0_0] : memref<8x256xf32, #tpu.memory_space<vmem>>, vector<8x256xf32>
    %c0_1 = arith.constant 0 : index
    %c0_2 = arith.constant 0 : index
    %1 = vector.load %arg2[%c0_1, %c0_2] : memref<256x250xbf16, #tpu.memory_space<vmem>>, vector<256x250xbf16>
    %2 = arith.truncf %0 : vector<8x256xf32> to vector<8x256xbf16>
    %3 = arith.extf %2 : vector<8x256xbf16> to vector<8x256xf32>
    %4 = arith.subf %0, %3 : vector<8x256xf32>
    %cst = arith.constant dense<0.000000e+00> : vector<8x250xf32>
    %5 = tpu.matmul %2, %1, %cst {dimension_numbers = #tpu.dot_dimension_numbers<[1], [0], [0], [1], [0, 0, 1, 1], [], []>} : vector<8x256xbf16>, vector<256x250xbf16>, vector<8x250xf32> -> vector<8x250xf32>
    %6 = arith.truncf %4 : vector<8x256xf32> to vector<8x256xbf16>
    %7 = arith.extf %6 : vector<8x256xbf16> to vector<8x256xf32>
    %8 = arith.subf %4, %7 : vector<8x256xf32>
    %cst_3 = arith.constant dense<0.000000e+00> : vector<8x250xf32>
    %9 = tpu.matmul %6, %1, %cst_3 {dimension_numbers = #tpu.dot_dimension_numbers<[1], [0], [0], [1], [0, 0, 1, 1], [], []>} : vector<8x256xbf16>, vector<256x250xbf16>, vector<8x250xf32> -> vector<8x250xf32>
    %10 = arith.addf %5, %9 : vector<8x250xf32>
    %11 = arith.truncf %8 : vector<8x256xf32> to vector<8x256xbf16>
    %cst_4 = arith.constant dense<0.000000e+00> : vector<8x250xf32>
    %12 = tpu.matmul %11, %1, %cst_4 {dimension_numbers = #tpu.dot_dimension_numbers<[1], [0], [0], [1], [0, 0, 1, 1], [], []>} : vector<8x256xbf16>, vector<256x250xbf16>, vector<8x250xf32> -> vector<8x250xf32>
    %13 = arith.addf %10, %12 : vector<8x250xf32>
    %c0_5 = arith.constant 0 : index
    %c0_6 = arith.constant 0 : index
    %14 = vector.load %arg3[%c0_5, %c0_6] : memref<8x250xf32, #tpu.memory_space<vmem>>, vector<8x250xf32>
    tpu.vector_store %arg3[%c0_5, %c0_6], %13 {strides = array<i32>} : memref<8x250xf32, #tpu.memory_space<vmem>>, vector<8x250xf32>,
    return
  }
  func.func @transform_0(%arg0: i32) -> (i32, i32) {
    %c0_i32 = arith.constant 0 : i32
    %c0_i32_0 = arith.constant 0 : i32
    return %arg0, %c0_i32 : i32, i32
  }
  func.func @transform_1(%arg0: i32) -> (i32, i32) {
    %c0_i32 = arith.constant 0 : i32
    %c0_i32_0 = arith.constant 0 : i32
    %c0_i32_1 = arith.constant 0 : i32
    return %c0_i32, %c0_i32_0 : i32, i32
  }
  func.func @transform_2(%arg0: i32) -> (i32, i32) {
    %c0_i32 = arith.constant 0 : i32
    %c0_i32_0 = arith.constant 0 : i32
    return %arg0, %c0_i32 : i32, i32
  }
}

</mosaic_0001>

<llo_original>
// kernel: tpu_custom_call.1
$region0: #{tpu_custom_call.1}
  #allocation0 [shape = 'u32[]', space=smem, size = 0x4, offset = 0x4, fixed_abs, tag = 'smem constant byte address 0x4 - core index']
  #allocation1 [shape = 'u32[144,128]{1,0:T(1,128)}', space=vmem, size = 0x12000, scoped, tag = 'internal scratch']
  %s0 = inlined_call_operand.hbm [shape: f32[8,256], index: 0, kind: input, shape index: {}]
  %s1 = inlined_call_operand.hbm [shape: bf16[256,250], index: 1, kind: input, shape index: {}]
  %s2 = inlined_call_operand.hbm [shape: f32[8,250], index: 2, kind: output, shape index: {}]
  %s3 = sld [smem:[#allocation0]]
  $region26: #{tpu_custom_call.1} parent=0
    _
  %s5 = ssub.s32 1, %s3
  %s6 = scalar_select 0, %s5, %s3
  $region1: #{tpu_custom_call.1} parent=0
    #allocation2 [shape = 'u8[8192]{0}', space=vmem, size = 0x2000, scoped, tag = 'input window, operand 0, single buffered']
    #allocation3 [shape = 's32[1]{0}', space=sflag, size = 0x4, scoped, tag = 'scoped memory for tpu_custom_call.1']
    #allocation4 [shape = 's32[1]{0}', space=sflag, size = 0x4, scoped, tag = 'scoped memory for tpu_custom_call.1']
    #allocation5 [shape = 'u8[131072]{0}', space=vmem, size = 0x20000, scoped, tag = 'input window, operand 1, single buffered']
    #allocation6 [shape = 's32[1]{0}', space=sflag, size = 0x4, scoped, tag = 'scoped memory for tpu_custom_call.1']
    #allocation7 [shape = 'u8[8192]{0}', space=vmem, size = 0x2000, scoped, tag = 'output window, operand 0, single buffered']
    %7 = vsyncpa [#allocation3], 0
    %8 = vsyncpa [#allocation6], 0
    %9 = vsyncpa [#allocation4], 0
    // Predicated region
    $region2: #{tpu_custom_call.1} parent=1 // pred_check
      _
    $region3: #{tpu_custom_call.1} parent=1 // pred_check_branch
      %11 = sbr.rel (0) target = $region5
    $region4: #{tpu_custom_call.1} parent=1 // pred_region
      %s13 = ssub.s32 256, 256
      %14 = vsyncadd [#allocation3], %s13
      %s16 = sshll.u32 [#allocation2], 4
      %s17 = int_to_ptr.vmem [resolvable:$true] %s16
      %19 = dma.hbm_to_vmem [thread:$0]  %s0, 256, %s17, [#allocation3]
    $region5: #{tpu_custom_call.1} parent=1 // pred_fallthru
      _
    // Predicated region
    $region6: #{tpu_custom_call.1} parent=1 // pred_check
      _
    $region7: #{tpu_custom_call.1} parent=1 // pred_check_branch
      %21 = sbr.rel (0) target = $region9
    $region8: #{tpu_custom_call.1} parent=1 // pred_region
      %s23 = ssub.s32 4096, 4096
      %24 = vsyncadd [#allocation6], %s23
      %s25 = sshll.u32 [#allocation5], 4
      %s26 = int_to_ptr.vmem [resolvable:$true] %s25
      %31 = dma.hbm_to_vmem [thread:$0]  %s1, 4096, %s26, [#allocation6], 128, 128, 8
    $region9: #{tpu_custom_call.1} parent=1 // pred_fallthru
      _
    // Predicated region
    $region10: #{tpu_custom_call.1} parent=1 // pred_check
      _
    $region11: #{tpu_custom_call.1} parent=1 // pred_check_branch
      %33 = sbr.rel (0) target = $region13
    $region12: #{tpu_custom_call.1} parent=1 // pred_region
      %34 = dma.done [#allocation3], 256
    $region13: #{tpu_custom_call.1} parent=1 // pred_fallthru
      _
    // Predicated region
    $region14: #{tpu_custom_call.1} parent=1 // pred_check
      _
    $region15: #{tpu_custom_call.1} parent=1 // pred_check_branch
      %36 = sbr.rel (0) target = $region17
    $region16: #{tpu_custom_call.1} parent=1 // pred_region
      %37 = dma.done [#allocation6], 4096
    $region17: #{tpu_custom_call.1} parent=1 // pred_fallthru
      _
    %v38 = vld [vmem:[#allocation2] sm:$0xff]
    %v39 = vld [vmem:[#allocation2 + $0x8] sm:$0xff]
    %v40 = vld [vmem:[#allocation5] sm:$0xff]
    %v41 = vld [vmem:[#allocation5 + $0x8] sm:$0xff]
    %v42 = vld [vmem:[#allocation5 + $0x10] sm:$0xff]
    %v43 = vld [vmem:[#allocation5 + $0x18] sm:$0xff]
    %v44 = vld [vmem:[#allocation5 + $0x20] sm:$0xff]
    %v45 = vld [vmem:[#allocation5 + $0x28] sm:$0xff]
    %v46 = vld [vmem:[#allocation5 + $0x30] sm:$0xff]
    %v47 = vld [vmem:[#allocation5 + $0x38] sm:$0xff]
    %v48 = vld [vmem:[#allocation5 + $0x40] sm:$0xff]
    %v49 = vld [vmem:[#allocation5 + $0x48] sm:$0xff]
    %v50 = vld [vmem:[#allocation5 + $0x50] sm:$0xff]
    %v51 = vld [vmem:[#allocation5 + $0x58] sm:$0xff]
    %v52 = vld [vmem:[#allocation5 + $0x60] sm:$0xff]
    %v53 = vld [vmem:[#allocation5 + $0x68] sm:$0xff]
    %v54 = vld [vmem:[#allocation5 + $0x70] sm:$0xff]
    %v55 = vld [vmem:[#allocation5 + $0x78] sm:$0xff]
    %v56 = vld [vmem:[#allocation5 + $0x80] sm:$0xff]
    %v57 = vld [vmem:[#allocation5 + $0x88] sm:$0xff]
    %v58 = vld [vmem:[#allocation5 + $0x90] sm:$0xff]
    %v59 = vld [vmem:[#allocation5 + $0x98] sm:$0xff]
    %v60 = vld [vmem:[#allocation5 + $0xa0] sm:$0xff]
    %v61 = vld [vmem:[#allocation5 + $0xa8] sm:$0xff]
    %v62 = vld [vmem:[#allocation5 + $0xb0] sm:$0xff]
    %v63 = vld [vmem:[#allocation5 + $0xb8] sm:$0xff]
    %v64 = vld [vmem:[#allocation5 + $0xc0] sm:$0xff]
    %v65 = vld [vmem:[#allocation5 + $0xc8] sm:$0xff]
    %v66 = vld [vmem:[#allocation5 + $0xd0] sm:$0xff]
    %v67 = vld [vmem:[#allocation5 + $0xd8] sm:$0xff]
    %v68 = vld [vmem:[#allocation5 + $0xe0] sm:$0xff]
    %v69 = vld [vmem:[#allocation5 + $0xe8] sm:$0xff]
    %v70 = vld [vmem:[#allocation5 + $0xf0] sm:$0xff]
    %v71 = vld [vmem:[#allocation5 + $0xf8] sm:$0xff]
    %v72 = vpack.c.bf16 %v38, %v38
    %v73 = vpack.c.bf16 %v39, %v39
    %v74 = vunpack.c.l.bf16 %v72
    %v75 = vunpack.c.l.bf16 %v73
    %v76 = vsub.f32 %v38, %v74
    %v77 = vsub.f32 %v39, %v75
    %v78 = vpack.c.bf16 %v76, %v76
    %v79 = vpack.c.bf16 %v77, %v77
    %v80 = vunpack.c.l.bf16 %v78
    %v81 = vunpack.c.l.bf16 %v79
    %v82 = vsub.f32 %v76, %v80
    %v83 = vsub.f32 %v77, %v81
    %v116 = vunpack.c.l.b16 %v40
    %v117 = vunpack.c.h.b16 %v40
    %v118 = vunpack.c.l.b16 %v41
    %v119 = vunpack.c.h.b16 %v41
    %v120 = vunpack.c.l.b16 %v42
    %v121 = vunpack.c.h.b16 %v42
    %v122 = vunpack.c.l.b16 %v43
    %v123 = vunpack.c.h.b16 %v43
    %v124 = vunpack.c.l.b16 %v44
    %v125 = vunpack.c.h.b16 %v44
    %v126 = vunpack.c.l.b16 %v45
    %v127 = vunpack.c.h.b16 %v45
    %v128 = vunpack.c.l.b16 %v46
    %v129 = vunpack.c.h.b16 %v46
    %v130 = vunpack.c.l.b16 %v47
    %v131 = vunpack.c.h.b16 %v47
    %v132 = vunpack.c.l.b16 %v48
    %v133 = vunpack.c.h.b16 %v48
    %v134 = vunpack.c.l.b16 %v49
    %v135 = vunpack.c.h.b16 %v49
    %v136 = vunpack.c.l.b16 %v50
    %v137 = vunpack.c.h.b16 %v50
    %v138 = vunpack.c.l.b16 %v51
    %v139 = vunpack.c.h.b16 %v51
    %v140 = vunpack.c.l.b16 %v52
    %v141 = vunpack.c.h.b16 %v52
    %v142 = vunpack.c.l.b16 %v53
    %v143 = vunpack.c.h.b16 %v53
    %v144 = vunpack.c.l.b16 %v54
    %v145 = vunpack.c.h.b16 %v54
    %v146 = vunpack.c.l.b16 %v55
    %v147 = vunpack.c.h.b16 %v55
    %v148 = vunpack.c.l.b16 %v56
    %v149 = vunpack.c.h.b16 %v56
    %v150 = vunpack.c.l.b16 %v57
    %v151 = vunpack.c.h.b16 %v57
    %v152 = vunpack.c.l.b16 %v58
    %v153 = vunpack.c.h.b16 %v58
    %v154 = vunpack.c.l.b16 %v59
    %v155 = vunpack.c.h.b16 %v59
    %v156 = vunpack.c.l.b16 %v60
    %v157 = vunpack.c.h.b16 %v60
    %v158 = vunpack.c.l.b16 %v61
    %v159 = vunpack.c.h.b16 %v61
    %v160 = vunpack.c.l.b16 %v62
    %v161 = vunpack.c.h.b16 %v62
    %v162 = vunpack.c.l.b16 %v63
    %v163 = vunpack.c.h.b16 %v63
    %v164 = vunpack.c.l.b16 %v64
    %v165 = vunpack.c.h.b16 %v64
    %v166 = vunpack.c.l.b16 %v65
    %v167 = vunpack.c.h.b16 %v65
    %v168 = vunpack.c.l.b16 %v66
    %v169 = vunpack.c.h.b16 %v66
    %v170 = vunpack.c.l.b16 %v67
    %v171 = vunpack.c.h.b16 %v67
    %v172 = vunpack.c.l.b16 %v68
    %v173 = vunpack.c.h.b16 %v68
    %v174 = vunpack.c.l.b16 %v69
    %v175 = vunpack.c.h.b16 %v69
    %v176 = vunpack.c.l.b16 %v70
    %v177 = vunpack.c.h.b16 %v70
    %v178 = vunpack.c.l.b16 %v71
    %v179 = vunpack.c.h.b16 %v71
    %v180 = vpack.c.b16 %v118, %v116
    %v181 = vpack.c.b16 %v119, %v117
    %v182 = vpack.c.b16 %v122, %v120
    %v183 = vpack.c.b16 %v123, %v121
    %v184 = vpack.c.b16 %v126, %v124
    %v185 = vpack.c.b16 %v127, %v125
    %v186 = vpack.c.b16 %v130, %v128
    %v187 = vpack.c.b16 %v131, %v129
    %v188 = vpack.c.b16 %v134, %v132
    %v189 = vpack.c.b16 %v135, %v133
    %v190 = vpack.c.b16 %v138, %v136
    %v191 = vpack.c.b16 %v139, %v137
    %v192 = vpack.c.b16 %v142, %v140
    %v193 = vpack.c.b16 %v143, %v141
    %v194 = vpack.c.b16 %v146, %v144
    %v195 = vpack.c.b16 %v147, %v145
    %v196 = vpack.c.b16 %v150, %v148
    %v197 = vpack.c.b16 %v151, %v149
    %v198 = vpack.c.b16 %v154, %v152
    %v199 = vpack.c.b16 %v155, %v153
    %v200 = vpack.c.b16 %v158, %v156
    %v201 = vpack.c.b16 %v159, %v157
    %v202 = vpack.c.b16 %v162, %v160
    %v203 = vpack.c.b16 %v163, %v161
    %v204 = vpack.c.b16 %v166, %v164
    %v205 = vpack.c.b16 %v167, %v165
    %v206 = vpack.c.b16 %v170, %v168
    %v207 = vpack.c.b16 %v171, %v169
    %v208 = vpack.c.b16 %v174, %v172
    %v209 = vpack.c.b16 %v175, %v173
    %v210 = vpack.c.b16 %v178, %v176
    %v211 = vpack.c.b16 %v179, %v177
    %244 = vmatprep.subr.bf16.mxu0 %v195
    %245 = vmatpush1.bf16.msra.mxu0 %v194
    %246 = vmatprep.subr.bf16.mxu0 %v193
    %247 = vmatpush1.bf16.msra.mxu0 %v192
    %248 = vmatprep.subr.bf16.mxu0 %v191
    %249 = vmatpush1.bf16.msra.mxu0 %v190
    %250 = vmatprep.subr.bf16.mxu0 %v189
    %251 = vmatpush1.bf16.msra.mxu0 %v188
    %252 = vmatprep.subr.bf16.mxu0 %v187
    %253 = vmatpush1.bf16.msra.mxu0 %v186
    %254 = vmatprep.subr.bf16.mxu0 %v185
    %255 = vmatpush1.bf16.msra.mxu0 %v184
    %256 = vmatprep.subr.bf16.mxu0 %v183
    %257 = vmatpush1.bf16.msra.mxu0 %v182
    %258 = vmatprep.subr.bf16.mxu0 %v181
    %259 = vmatpush1.bf16.msra.mxu0 %v180
    %260 = vmatprep.subr.bf16.mxu0 %v211
    %261 = vmatpush2.bf16.msra.mxu0 %v210
    %262 = vmatprep.subr.bf16.mxu0 %v209
    %263 = vmatpush2.bf16.msra.mxu0 %v208
    %264 = vmatprep.subr.bf16.mxu0 %v207
    %265 = vmatpush2.bf16.msra.mxu0 %v206
    %266 = vmatprep.subr.bf16.mxu0 %v205
    %267 = vmatpush2.bf16.msra.mxu0 %v204
    %268 = vmatprep.subr.bf16.mxu0 %v203
    %269 = vmatpush2.bf16.msra.mxu0 %v202
    %270 = vmatprep.subr.bf16.mxu0 %v201
    %271 = vmatpush2.bf16.msra.mxu0 %v200
    %272 = vmatprep.subr.bf16.mxu0 %v199
    %273 = vmatpush2.bf16.msra.mxu0 %v198
    %274 = vmatprep.subr.bf16.mxu0 %v197
    %275 = vmatpush2.bf16.msra.mxu0 %v196
    %276 = vmatprep.mubr.bf16.mxu0 %v79
    %277 = vmatmul.mubr.bf16.gmra.mxu0 %v78
    %v278 = vpop.f32.mrf.mxu0
    %v279 = vadd.f32 0.0, %v278
    %v280 = vpop.f32.mrf.mxu0
    %v281 = vadd.f32 0.0, %v280
    %v282 = vpop.f32.mrf.mxu0
    %v283 = vpop.f32.mrf.mxu0
    %284 = vdwg.mxu0
    %285 = vmatprep.subr.bf16.mxu0 %v195
    %286 = vmatpush1.bf16.msra.mxu0 %v194
    %287 = vmatprep.subr.bf16.mxu0 %v193
    %288 = vmatpush1.bf16.msra.mxu0 %v192
    %289 = vmatprep.subr.bf16.mxu0 %v191
    %290 = vmatpush1.bf16.msra.mxu0 %v190
    %291 = vmatprep.subr.bf16.mxu0 %v189
    %292 = vmatpush1.bf16.msra.mxu0 %v188
    %293 = vmatprep.subr.bf16.mxu0 %v187
    %294 = vmatpush1.bf16.msra.mxu0 %v186
    %295 = vmatprep.subr.bf16.mxu0 %v185
    %296 = vmatpush1.bf16.msra.mxu0 %v184
    %297 = vmatprep.subr.bf16.mxu0 %v183
    %298 = vmatpush1.bf16.msra.mxu0 %v182
    %299 = vmatprep.subr.bf16.mxu0 %v181
    %300 = vmatpush1.bf16.msra.mxu0 %v180
    %301 = vmatprep.subr.bf16.mxu0 %v211
    %302 = vmatpush2.bf16.msra.mxu0 %v210
    %303 = vmatprep.subr.bf16.mxu0 %v209
    %304 = vmatpush2.bf16.msra.mxu0 %v208
    %305 = vmatprep.subr.bf16.mxu0 %v207
    %306 = vmatpush2.bf16.msra.mxu0 %v206
    %307 = vmatprep.subr.bf16.mxu0 %v205
    %308 = vmatpush2.bf16.msra.mxu0 %v204
    %309 = vmatprep.subr.bf16.mxu0 %v203
    %310 = vmatpush2.bf16.msra.mxu0 %v202
    %311 = vmatprep.subr.bf16.mxu0 %v201
    %312 = vmatpush2.bf16.msra.mxu0 %v200
    %313 = vmatprep.subr.bf16.mxu0 %v199
    %314 = vmatpush2.bf16.msra.mxu0 %v198
    %315 = vmatprep.subr.bf16.mxu0 %v197
    %316 = vmatpush2.bf16.msra.mxu0 %v196
    %317 = vmatprep.mubr.bf16.mxu0 %v73
    %318 = vmatmul.mubr.bf16.gmra.mxu0 %v72
    %v319 = vpop.f32.mrf.mxu0
    %v320 = vadd.f32 %v279, %v319
    %v321 = vpop.f32.mrf.mxu0
    %v322 = vadd.f32 %v281, %v321
    %v323 = vpop.f32.mrf.mxu0
    %v324 = vpop.f32.mrf.mxu0
    %325 = vdwg.mxu0
    %v326 = vpack.c.bf16 %v82, %v82
    %v327 = vpack.c.bf16 %v83, %v83
    %328 = vmatprep.subr.bf16.mxu0 %v195
    %329 = vmatpush1.bf16.msra.mxu0 %v194
    %330 = vmatprep.subr.bf16.mxu0 %v193
    %331 = vmatpush1.bf16.msra.mxu0 %v192
    %332 = vmatprep.subr.bf16.mxu0 %v191
    %333 = vmatpush1.bf16.msra.mxu0 %v190
    %334 = vmatprep.subr.bf16.mxu0 %v189
    %335 = vmatpush1.bf16.msra.mxu0 %v188
    %336 = vmatprep.subr.bf16.mxu0 %v187
    %337 = vmatpush1.bf16.msra.mxu0 %v186
    %338 = vmatprep.subr.bf16.mxu0 %v185
    %339 = vmatpush1.bf16.msra.mxu0 %v184
    %340 = vmatprep.subr.bf16.mxu0 %v183
    %341 = vmatpush1.bf16.msra.mxu0 %v182
    %342 = vmatprep.subr.bf16.mxu0 %v181
    %343 = vmatpush1.bf16.msra.mxu0 %v180
    %344 = vmatprep.subr.bf16.mxu0 %v211
    %345 = vmatpush2.bf16.msra.mxu0 %v210
    %346 = vmatprep.subr.bf16.mxu0 %v209
    %347 = vmatpush2.bf16.msra.mxu0 %v208
    %348 = vmatprep.subr.bf16.mxu0 %v207
    %349 = vmatpush2.bf16.msra.mxu0 %v206
    %350 = vmatprep.subr.bf16.mxu0 %v205
    %351 = vmatpush2.bf16.msra.mxu0 %v204
    %352 = vmatprep.subr.bf16.mxu0 %v203
    %353 = vmatpush2.bf16.msra.mxu0 %v202
    %354 = vmatprep.subr.bf16.mxu0 %v201
    %355 = vmatpush2.bf16.msra.mxu0 %v200
    %356 = vmatprep.subr.bf16.mxu0 %v199
    %357 = vmatpush2.bf16.msra.mxu0 %v198
    %358 = vmatprep.subr.bf16.mxu0 %v197
    %359 = vmatpush2.bf16.msra.mxu0 %v196
    %360 = vmatprep.mubr.bf16.mxu0 %v327
    %361 = vmatmul.mubr.bf16.gmra.mxu0 %v326
    %v362 = vpop.f32.mrf.mxu0
    %v363 = vadd.f32 0.0, %v362
    %v364 = vpop.f32.mrf.mxu0
    %v365 = vadd.f32 0.0, %v364
    %v366 = vpop.f32.mrf.mxu0
    %v367 = vpop.f32.mrf.mxu0
    %368 = vdwg.mxu0
    %v369 = vadd.f32 %v320, %v363
    %v370 = vadd.f32 %v322, %v365
    %371 = vst [vmem:[#allocation7] sm:$0xff] %v369
    %vm372 = vcmask 998400
    %373 = vst.msk [vmem:[#allocation7 + $0x8] sm:$0xff] %vm372, %v370
    // Predicated region
    $region18: #{tpu_custom_call.1} parent=1 // pred_check
      _
    $region19: #{tpu_custom_call.1} parent=1 // pred_check_branch
      %375 = sbr.rel (0) target = $region21
    $region20: #{tpu_custom_call.1} parent=1 // pred_region
      %s377 = ssub.s32 256, 256
      %378 = vsyncadd [#allocation4], %s377
      %s380 = sshll.u32 [#allocation7], 4
      %s381 = int_to_ptr.vmem [resolvable:$true] %s380
      %383 = dma.vmem_to_hbm [thread:$0]  %s381, 256, %s2, [#allocation4]
    $region21: #{tpu_custom_call.1} parent=1 // pred_fallthru
      _
    // Predicated region
    $region22: #{tpu_custom_call.1} parent=1 // pred_check
      _
    $region23: #{tpu_custom_call.1} parent=1 // pred_check_branch
      %385 = sbr.rel (0) target = $region25
    $region24: #{tpu_custom_call.1} parent=1 // pred_region
      %386 = dma.done [#allocation4], 256
    $region25: #{tpu_custom_call.1} parent=1 // pred_fallthru
      _
    %387 = vsyncpa [#allocation3], 1
    %388 = vsyncpa [#allocation6], 1
    %389 = vsyncpa [#allocation4], 1

</llo_original>
